<compile_context>
chip_gen: v5e
topology: v5e:2x2
jax: 0.10.0
libtpu: 0.0.40
codegen_flags: <defaults>
</compile_context>

<pallas_src>
import jax
import jax.numpy as jnp
import numpy as np
from jax.experimental import pallas as pl
from jax.experimental.pallas import tpu as pltpu


# ---------------------------------------------------------------------------
# kernel: LayerNorm over the last dim of a (block_rows, C) tile
# ---------------------------------------------------------------------------
def _layernorm_kernel(x_ref, w_ref, b_ref, o_ref):
    # x_ref: (TR, C)   w_ref/b_ref: (1, C)   o_ref: (TR, C)
    x = x_ref[...].astype(jnp.float32)
    c = x.shape[-1]
    inv_c = jnp.float32(1.0 / c)

    mu = jnp.sum(x, axis=-1, keepdims=True) * inv_c            # (TR, 1)
    xc = x - mu
    var = jnp.sum(xc * xc, axis=-1, keepdims=True) * inv_c     # biased (unbiased=False)
    inv_std = jax.lax.rsqrt(var + jnp.float32(1e-5))           # EUP rsqrt

    w = w_ref[...].astype(jnp.float32)                         # (1, C) broadcasts over rows
    b = b_ref[...].astype(jnp.float32)
    o_ref[...] = (xc * inv_std * w + b).astype(o_ref.dtype)


def _pick_block_rows(R, C, itemsize, vmem_budget=8 * 1024 * 1024):
    """Largest row block that (a) divides R, (b) is a multiple of 8 (or == R),
    (c) keeps double-buffered in+out blocks well inside VMEM, and (d) when the
    whole array would fit, still leaves >=2 grid steps for megacore (v7x)."""
    max_rows = max(8, vmem_budget // (4 * C * itemsize))
    if R <= max_rows:
        half = R // 2
        if R % 2 == 0 and half >= 8 and half % 8 == 0:
            return half                       # 2 parallel grid steps
        return R                              # whole array in one step
    br = (max_rows // 8) * 8
    while br >= 8 and R % br != 0:
        br -= 8
    return br if br >= 8 else R


# ---------------------------------------------------------------------------
# wrapper
# ---------------------------------------------------------------------------
def withbias_layernorm(x, weight, bias):
    """x: (..., C), weight/bias: (C,). Returns LayerNorm over the last dim."""
    orig_shape = x.shape
    C = orig_shape[-1]
    R = int(np.prod(orig_shape[:-1])) if len(orig_shape) > 1 else 1

    x2 = x.reshape(R, C)
    w2 = weight.reshape(1, C)
    b2 = bias.reshape(1, C)

    block_rows = _pick_block_rows(R, C, x2.dtype.itemsize)
    grid = (R // block_rows,)

    out = pl.pallas_call(
        _layernorm_kernel,
        out_shape=jax.ShapeDtypeStruct((R, C), x.dtype),
        grid=grid,
        in_specs=[
            pl.BlockSpec((block_rows, C), lambda i: (i, 0)),
            pl.BlockSpec((1, C), lambda i: (0, 0)),
            pl.BlockSpec((1, C), lambda i: (0, 0)),
        ],
        out_specs=pl.BlockSpec((block_rows, C), lambda i: (i, 0)),
        compiler_params=pltpu.CompilerParams(dimension_semantics=("parallel",)),
    )(x2, w2, b2)
    return out.reshape(orig_shape)


# ---------------------------------------------------------------------------
# pure-JAX reference (mirrors the PyTorch forward exactly)
# ---------------------------------------------------------------------------
def reference(x, weight, bias):
    mu = jnp.mean(x, axis=-1, keepdims=True)
    var = jnp.mean((x - mu) ** 2, axis=-1, keepdims=True)      # unbiased=False
    return (x - mu) / jnp.sqrt(var + 1e-5) * weight + bias


if __name__ == "__main__":
    key = jax.random.PRNGKey(0)
    ks = jax.random.split(key, 3)

    # Restormer usage: NCHW -> (B, H*W, C), LayerNorm over C.
    B, HW, C = 2, 16 * 16, 64
    x = jax.random.normal(ks[0], (B, HW, C), jnp.float32)
    weight = 1.0 + 0.1 * jax.random.normal(ks[1], (C,), jnp.float32)
    bias = 0.1 * jax.random.normal(ks[2], (C,), jnp.float32)

    out = withbias_layernorm(x, weight, bias)
    out = jax.block_until_ready(out)

    ref = reference(x, weight, bias)
    assert out.shape == x.shape
    np.testing.assert_allclose(np.asarray(out), np.asarray(ref), atol=1e-4, rtol=1e-4)
    print("KERNEL_OK")
</pallas_src>

<mosaic_0001>
module attributes {stable_mosaic.version = 11 : i64} {
  func.func @_layernorm_kernel(%arg0: i32, %arg1: memref<256x64xf32, #tpu.memory_space<vmem>>, %arg2: memref<1x64xf32, #tpu.memory_space<vmem>>, %arg3: memref<1x64xf32, #tpu.memory_space<vmem>>, %arg4: memref<256x64xf32, #tpu.memory_space<vmem>>) attributes {dimension_semantics = [#tpu.dimension_semantics<parallel>], iteration_bounds = array<i64: 2>, scalar_prefetch = 0 : i64, scratch_operands = 0 : i64, tpu.core_type = #tpu.core_type<tc>, window_params = [{transform_indices = @transform_0, window_bounds = array<i64: 256, 64>}, {pipeline_mode = #tpu.pipeline_mode<synchronous>, transform_indices = @transform_1, window_bounds = array<i64: 1, 64>}, {pipeline_mode = #tpu.pipeline_mode<synchronous>, transform_indices = @transform_2, window_bounds = array<i64: 1, 64>}, {transform_indices = @transform_3, window_bounds = array<i64: 256, 64>}]} {
    %c0 = arith.constant 0 : index
    %c0_0 = arith.constant 0 : index
    %0 = vector.load %arg1[%c0, %c0_0] : memref<256x64xf32, #tpu.memory_space<vmem>>, vector<256x64xf32>
    %cst = arith.constant dense<0.000000e+00> : vector<256xf32>
    %1 = vector.multi_reduction <add>, %0, %cst [1] : vector<256x64xf32> to vector<256xf32>
    %2 = vector.shape_cast %1 : vector<256xf32> to vector<256x1xf32>
    %cst_1 = arith.constant 1.562500e-02 : f32
    %3 = vector.broadcast %cst_1 : f32 to vector<256x1xf32>
    %4 = arith.mulf %2, %3 : vector<256x1xf32>
    %5 = vector.broadcast %4 : vector<256x1xf32> to vector<256x64xf32>
    %6 = arith.subf %0, %5 : vector<256x64xf32>
    %7 = arith.mulf %6, %6 : vector<256x64xf32>
    %cst_2 = arith.constant dense<0.000000e+00> : vector<256xf32>
    %8 = vector.multi_reduction <add>, %7, %cst_2 [1] : vector<256x64xf32> to vector<256xf32>
    %9 = vector.shape_cast %8 : vector<256xf32> to vector<256x1xf32>
    %cst_3 = arith.constant 1.562500e-02 : f32
    %10 = vector.broadcast %cst_3 : f32 to vector<256x1xf32>
    %11 = arith.mulf %9, %10 : vector<256x1xf32>
    %cst_4 = arith.constant 9.99999974E-6 : f32
    %12 = vector.broadcast %cst_4 : f32 to vector<256x1xf32>
    %13 = arith.addf %11, %12 : vector<256x1xf32>
    %14 = math.rsqrt %13 : vector<256x1xf32>
    %c0_5 = arith.constant 0 : index
    %c0_6 = arith.constant 0 : index
    %15 = vector.load %arg2[%c0_5, %c0_6] : memref<1x64xf32, #tpu.memory_space<vmem>>, vector<1x64xf32>
    %c0_7 = arith.constant 0 : index
    %c0_8 = arith.constant 0 : index
    %16 = vector.load %arg3[%c0_7, %c0_8] : memref<1x64xf32, #tpu.memory_space<vmem>>, vector<1x64xf32>
    %17 = vector.broadcast %14 : vector<256x1xf32> to vector<256x64xf32>
    %18 = arith.mulf %6, %17 : vector<256x64xf32>
    %19 = vector.broadcast %15 : vector<1x64xf32> to vector<256x64xf32>
    %20 = arith.mulf %18, %19 : vector<256x64xf32>
    %21 = vector.broadcast %16 : vector<1x64xf32> to vector<256x64xf32>
    %22 = arith.addf %20, %21 : vector<256x64xf32>
    %c0_9 = arith.constant 0 : index
    %c0_10 = arith.constant 0 : index
    %23 = vector.load %arg4[%c0_9, %c0_10] : memref<256x64xf32, #tpu.memory_space<vmem>>, vector<256x64xf32>
    tpu.vector_store %arg4[%c0_9, %c0_10], %22 {strides = array<i32>} : memref<256x64xf32, #tpu.memory_space<vmem>>, vector<256x64xf32>,
    return
  }
  func.func @transform_0(%arg0: i32) -> (i32, i32) {
    %c0_i32 = arith.constant 0 : i32
    %c0_i32_0 = arith.constant 0 : i32
    return %arg0, %c0_i32 : i32, i32
  }
  func.func @transform_1(%arg0: i32) -> (i32, i32) {
    %c0_i32 = arith.constant 0 : i32
    %c0_i32_0 = arith.constant 0 : i32
    %c0_i32_1 = arith.constant 0 : i32
    return %c0_i32, %c0_i32_0 : i32, i32
  }
  func.func @transform_2(%arg0: i32) -> (i32, i32) {
    %c0_i32 = arith.constant 0 : i32
    %c0_i32_0 = arith.constant 0 : i32
    %c0_i32_1 = arith.constant 0 : i32
    return %c0_i32, %c0_i32_0 : i32, i32
  }
  func.func @transform_3(%arg0: i32) -> (i32, i32) {
    %c0_i32 = arith.constant 0 : i32
    %c0_i32_0 = arith.constant 0 : i32
    return %arg0, %c0_i32 : i32, i32
  }
}

</mosaic_0001>

<llo_original>
// kernel: tpu_custom_call.1
$region0: #{tpu_custom_call.1}
  #allocation0 [shape = 'u32[]', space=smem, size = 0x4, offset = 0x4, fixed_abs, tag = 'smem constant byte address 0x4 - core index']
  #allocation1 [shape = 'u32[72,128]{1,0:T(1,128)}', space=vmem, size = 0x9000, scoped, tag = 'internal scratch']
  %s0 = inlined_call_operand.vmem [shape: f32[512,64], index: 0, kind: input, shape index: {}]
  %s1 = inlined_call_operand.vmem [shape: f32[1,64], index: 1, kind: input, shape index: {}]
  %s2 = inlined_call_operand.vmem [shape: f32[1,64], index: 2, kind: input, shape index: {}]
  %s3 = inlined_call_operand.vmem [shape: f32[512,64], index: 3, kind: output, shape index: {}]
  %s4 = sld [smem:[#allocation0]]
  $region45: #{tpu_custom_call.1} parent=0
    _
  %s6 = ssub.s32 1, %s4
  %s7 = scalar_select 0, %s6, %s4
  loop: start=0, step=1, limit=4
  $region2: #{tpu_custom_call.1} parent=0 // loop_pre_header
    _
  $region3: #{tpu_custom_call.1} parent=0 // loop_header
    %s9 = sphi 0, %s13
    %p10 = scmp.ge.s32.totalorder %s9, 4
    %s19 = sphi 0, %s21
    %s22 = sphi 0, %s19
    %s23 = sphi 0, %s22
    %s39 = sphi 0, %s23
    %s43 = sphi 0, %s43
    %s45 = sphi 0, %s43
    %s46 = sphi 0, %s45
    %s60 = sphi 0, %s46
    %s64 = sphi 0, %s64
    %s66 = sphi 0, %s64
    %s67 = sphi 0, %s66
    %s81 = sphi 0, %s67
    %s87 = sphi 0, %s89
    %s90 = sphi 0, %s87
    %s91 = sphi 0, %s90
    %s107 = sphi 0, %s91
  $region4: #{tpu_custom_call.1} parent=0 // loop_header_branch
    %12 = sbr.rel (%p10) target = $region8
  $region5: #{tpu_custom_call.1} parent=0 // loop_body
    %s14 = ssub.s32 %s9, 1
    %s15 = ssub.s32 %s9, 2
    %s16 = sadd.s32 %s9, 1
    %s17 = ssub.s32 %s9, %s16
    %p18 = scmp.eq.s32.totalorder %s17, 0
    %s20 = sadd.s32 %s19, 1
    %s21 = scalar_select %p18, %s19, %s20
    %p24 = pneg %p18
    %p25 = scmp.eq.s32.totalorder %s9, 1
    %p26 = por %p24, %p25
    %p27 = scmp.ne.s32.totalorder %s19, %s22
    %p28 = scmp.eq.s32.totalorder %s9, 0
    %p29 = por %p27, %p28
    %p30 = scmp.ne.s32.totalorder %s19, %s22
    %p31 = scmp.eq.s32.totalorder %s14, 1
    %p32 = por %p30, %p31
    %p33 = scmp.ne.s32.totalorder %s22, %s23
    %p34 = scmp.eq.s32.totalorder %s14, 0
    %p35 = por %p33, %p34
    %p36 = scmp.ne.s32.totalorder %s22, %s23
    %p37 = scmp.eq.s32.totalorder %s15, 1
    %p38 = por %p36, %p37
    %p40 = scmp.ne.s32.totalorder %s23, %s39
    %p41 = scmp.eq.s32.totalorder %s15, 0
    %p42 = por %p40, %p41
    %s44 = sadd.s32 %s43, 1
    %p47 = scmp.eq.s32.totalorder %s9, 1
    %p48 = scmp.ne.s32.totalorder %s43, %s45
    %p49 = scmp.eq.s32.totalorder %s9, 0
    %p50 = por %p48, %p49
    %p51 = scmp.ne.s32.totalorder %s43, %s45
    %p52 = scmp.eq.s32.totalorder %s14, 1
    %p53 = por %p51, %p52
    %p54 = scmp.ne.s32.totalorder %s45, %s46
    %p55 = scmp.eq.s32.totalorder %s14, 0
    %p56 = por %p54, %p55
    %p57 = scmp.ne.s32.totalorder %s45, %s46
    %p58 = scmp.eq.s32.totalorder %s15, 1
    %p59 = por %p57, %p58
    %p61 = scmp.ne.s32.totalorder %s46, %s60
    %p62 = scmp.eq.s32.totalorder %s15, 0
    %p63 = por %p61, %p62
    %s65 = sadd.s32 %s64, 1
    %p68 = scmp.eq.s32.totalorder %s9, 1
    %p69 = scmp.ne.s32.totalorder %s64, %s66
    %p70 = scmp.eq.s32.totalorder %s9, 0
    %p71 = por %p69, %p70
    %p72 = scmp.ne.s32.totalorder %s64, %s66
    %p73 = scmp.eq.s32.totalorder %s14, 1
    %p74 = por %p72, %p73
    %p75 = scmp.ne.s32.totalorder %s66, %s67
    %p76 = scmp.eq.s32.totalorder %s14, 0
    %p77 = por %p75, %p76
    %p78 = scmp.ne.s32.totalorder %s66, %s67
    %p79 = scmp.eq.s32.totalorder %s15, 1
    %p80 = por %p78, %p79
    %p82 = scmp.ne.s32.totalorder %s67, %s81
    %p83 = scmp.eq.s32.totalorder %s15, 0
    %p84 = por %p82, %p83
    %s85 = ssub.s32 %s9, %s16
    %p86 = scmp.eq.s32.totalorder %s85, 0
    %s88 = sadd.s32 %s87, 1
    %s89 = scalar_select %p86, %s87, %s88
    %p92 = pneg %p86
    %p93 = scmp.eq.s32.totalorder %s9, 1
    %p94 = por %p92, %p93
    %p95 = scmp.ne.s32.totalorder %s87, %s90
    %p96 = scmp.eq.s32.totalorder %s9, 0
    %p97 = por %p95, %p96
    %p98 = scmp.ne.s32.totalorder %s87, %s90
    %p99 = scmp.eq.s32.totalorder %s14, 1
    %p100 = por %p98, %p99
    %p101 = scmp.ne.s32.totalorder %s90, %s91
    %p102 = scmp.eq.s32.totalorder %s14, 0
    %p103 = por %p101, %p102
    %p104 = scmp.ne.s32.totalorder %s90, %s91
    %p105 = scmp.eq.s32.totalorder %s15, 1
    %p106 = por %p104, %p105
    %p108 = scmp.ne.s32.totalorder %s91, %s107
    %p109 = scmp.eq.s32.totalorder %s15, 0
    %p110 = por %p108, %p109
    %p111 = scmp.le.s32.totalorder 1, %s9
    %p112 = scmp.lt.s32.totalorder %s9, 3
    %p113 = pnand %p111, %p112
    %p114 = pneg %p113
    // Predicated region
    $region9: #{tpu_custom_call.1} parent=5 // pred_check
      _
    $region10: #{tpu_custom_call.1} parent=5 // pred_check_branch
      %116 = sbr.rel (%p113) target = $region12
    $region11: #{tpu_custom_call.1} parent=5 // pred_region
      %s117 = ssub.s32 %s9, 1
      // Predicated region
      $region13: #{tpu_custom_call.1} parent=11 // pred_check
        %p118 = pneg %p56
      $region14: #{tpu_custom_call.1} parent=11 // pred_check_branch
        %120 = sbr.rel (%p118) target = $region16
      $region15: #{tpu_custom_call.1} parent=11 // pred_region
        _
      $region16: #{tpu_custom_call.1} parent=11 // pred_fallthru
        _
      // Predicated region
      $region17: #{tpu_custom_call.1} parent=11 // pred_check
        %p121 = pneg %p77
      $region18: #{tpu_custom_call.1} parent=11 // pred_check_branch
        %123 = sbr.rel (%p121) target = $region20
      $region19: #{tpu_custom_call.1} parent=11 // pred_region
        _
      $region20: #{tpu_custom_call.1} parent=11 // pred_fallthru
        _
    $region12: #{tpu_custom_call.1} parent=5 // pred_fallthru
      _
    %p124 = scmp.lt.s32.totalorder %s9, 2
    // Predicated region
    $region21: #{tpu_custom_call.1} parent=5 // pred_check
      %p125 = pneg %p124
    $region22: #{tpu_custom_call.1} parent=5 // pred_check_branch
      %127 = sbr.rel (%p125) target = $region24
    $region23: #{tpu_custom_call.1} parent=5 // pred_region
      // Predicated region
      $region25: #{tpu_custom_call.1} parent=23 // pred_check
        %p128 = pneg %p29
      $region26: #{tpu_custom_call.1} parent=23 // pred_check_branch
        %130 = sbr.rel (%p128) target = $region28
      $region27: #{tpu_custom_call.1} parent=23 // pred_region
        %s131 = smul.u32 32, %s9
        %p132 = scmp.lt.s32.totalorder %s131, 63
        %s133 = scalar_select %p132, %s131, 63
        %s134 = smul.addr %s133, 8
        %s135 = scalar_lea.vmem %s0, %s134
        %s136 = smul.u32 32, %s9
      $region28: #{tpu_custom_call.1} parent=23 // pred_fallthru
        _
    $region24: #{tpu_custom_call.1} parent=5 // pred_fallthru
      _
    %p137 = scmp.le.s32.totalorder 1, %s9
    %p138 = scmp.lt.s32.totalorder %s9, 3
    %p139 = pnand %p137, %p138
    %p140 = pneg %p139
    // Predicated region
    $region29: #{tpu_custom_call.1} parent=5 // pred_check
      _
    $region30: #{tpu_custom_call.1} parent=5 // pred_check_branch
      %142 = sbr.rel (%p139) target = $region32
    $region31: #{tpu_custom_call.1} parent=5 // pred_region
      %s143 = ssub.s32 %s9, 1
      %s144 = smul.u32 32, %s14
      %p145 = scmp.lt.s32.totalorder %s144, 63
      %s146 = scalar_select %p145, %s144, 63
      %s147 = smul.addr %s146, 8
      %s148 = scalar_lea.vmem %s0, %s147
      %p149 = pneg %p35
      %p150 = pneg %p32
      %p151 = pneg %p56
      %p152 = pneg %p53
      %p153 = pneg %p77
      %p154 = pneg %p74
      %p155 = pneg %p103
      %p156 = pneg %p100
      %s157 = smul.u32 32, %s14
      %p158 = scmp.lt.s32.totalorder %s157, 63
      %s159 = scalar_select %p158, %s157, 63
      %s160 = smul.addr %s159, 8
      %s161 = scalar_lea.vmem %s3, %s160
      %s162 = smul.u32 32, %s14
      %p163 = scmp.lt.s32.totalorder %s162, 63
      %s164 = scalar_select %p163, %s162, 63
      %s165 = smul.addr %s164, 8
      %s166 = scalar_lea.vmem %s0, %s165
      %s167 = smul.u32 32, %s14
      %s168 = smul.u32 32, %s14
      %p169 = scmp.lt.s32.totalorder %s168, 63
      %s170 = scalar_select %p169, %s168, 63
      %s171 = smul.addr %s170, 8
      %s172 = scalar_lea.vmem %s3, %s171
      %s173 = smul.u32 32, %s14
      %v174 = vld [vmem:[%s166] sm:$0xff]
      %v175 = vld [vmem:[%s166 + $0x8] sm:$0xff]
      %v176 = vld [vmem:[%s166 + $0x10] sm:$0xff]
      %v177 = vld [vmem:[%s166 + $0x18] sm:$0xff]
      %v178 = vld [vmem:[%s166 + $0x20] sm:$0xff]
      %v179 = vld [vmem:[%s166 + $0x28] sm:$0xff]
      %v180 = vld [vmem:[%s166 + $0x30] sm:$0xff]
      %v181 = vld [vmem:[%s166 + $0x38] sm:$0xff]
      %v182 = vld [vmem:[%s166 + $0x40] sm:$0xff]
      %v183 = vld [vmem:[%s166 + $0x48] sm:$0xff]
      %v184 = vld [vmem:[%s166 + $0x50] sm:$0xff]
      %v185 = vld [vmem:[%s166 + $0x58] sm:$0xff]
      %v186 = vld [vmem:[%s166 + $0x60] sm:$0xff]
      %v187 = vld [vmem:[%s166 + $0x68] sm:$0xff]
      %v188 = vld [vmem:[%s166 + $0x70] sm:$0xff]
      %v189 = vld [vmem:[%s166 + $0x78] sm:$0xff]
      %v190 = vld [vmem:[%s166 + $0x80] sm:$0xff]
      %v191 = vld [vmem:[%s166 + $0x88] sm:$0xff]
      %v192 = vld [vmem:[%s166 + $0x90] sm:$0xff]
      %v193 = vld [vmem:[%s166 + $0x98] sm:$0xff]
      %v194 = vld [vmem:[%s166 + $0xa0] sm:$0xff]
      %v195 = vld [vmem:[%s166 + $0xa8] sm:$0xff]
      %v196 = vld [vmem:[%s166 + $0xb0] sm:$0xff]
      %v197 = vld [vmem:[%s166 + $0xb8] sm:$0xff]
      %v198 = vld [vmem:[%s166 + $0xc0] sm:$0xff]
      %v199 = vld [vmem:[%s166 + $0xc8] sm:$0xff]
      %v200 = vld [vmem:[%s166 + $0xd0] sm:$0xff]
      %v201 = vld [vmem:[%s166 + $0xd8] sm:$0xff]
      %v202 = vld [vmem:[%s166 + $0xe0] sm:$0xff]
      %v203 = vld [vmem:[%s166 + $0xe8] sm:$0xff]
      %v204 = vld [vmem:[%s166 + $0xf0] sm:$0xff]
      %v205 = vld [vmem:[%s166 + $0xf8] sm:$0xff]
      %vm206 = vcmask 523264
      %v207 = vsel %vm206, %v174, 0.0
      %208 = vadd.xlane.f32.xlu0 %v207
      %v209 = vpop.xlane.xlu0 %208
      %v210 = vsel %vm206, %v175, 0.0
      %211 = vadd.xlane.f32.xlu0 %v210
      %v212 = vpop.xlane.xlu0 %211
      %v213 = vsel %vm206, %v176, 0.0
      %214 = vadd.xlane.f32.xlu0 %v213
      %v215 = vpop.xlane.xlu0 %214
      %v216 = vsel %vm206, %v177, 0.0
      %217 = vadd.xlane.f32.xlu0 %v216
      %v218 = vpop.xlane.xlu0 %217
      %v219 = vsel %vm206, %v178, 0.0
      %220 = vadd.xlane.f32.xlu0 %v219
      %v221 = vpop.xlane.xlu0 %220
      %v222 = vsel %vm206, %v179, 0.0
      %223 = vadd.xlane.f32.xlu0 %v222
      %v224 = vpop.xlane.xlu0 %223
      %v225 = vsel %vm206, %v180, 0.0
      %226 = vadd.xlane.f32.xlu0 %v225
      %v227 = vpop.xlane.xlu0 %226
      %v228 = vsel %vm206, %v181, 0.0
      %229 = vadd.xlane.f32.xlu0 %v228
      %v230 = vpop.xlane.xlu0 %229
      %v231 = vsel %vm206, %v182, 0.0
      %232 = vadd.xlane.f32.xlu0 %v231
      %v233 = vpop.xlane.xlu0 %232
      %v234 = vsel %vm206, %v183, 0.0
      %235 = vadd.xlane.f32.xlu0 %v234
      %v236 = vpop.xlane.xlu0 %235
      %v237 = vsel %vm206, %v184, 0.0
      %238 = vadd.xlane.f32.xlu0 %v237
      %v239 = vpop.xlane.xlu0 %238
      %v240 = vsel %vm206, %v185, 0.0
      %241 = vadd.xlane.f32.xlu0 %v240
      %v242 = vpop.xlane.xlu0 %241
      %v243 = vsel %vm206, %v186, 0.0
      %244 = vadd.xlane.f32.xlu0 %v243
      %v245 = vpop.xlane.xlu0 %244
      %v246 = vsel %vm206, %v187, 0.0
      %247 = vadd.xlane.f32.xlu0 %v246
      %v248 = vpop.xlane.xlu0 %247
      %v249 = vsel %vm206, %v188, 0.0
      %250 = vadd.xlane.f32.xlu0 %v249
      %v251 = vpop.xlane.xlu0 %250
      %v252 = vsel %vm206, %v189, 0.0
      %253 = vadd.xlane.f32.xlu0 %v252
      %v254 = vpop.xlane.xlu0 %253
      %v255 = vsel %vm206, %v190, 0.0
      %256 = vadd.xlane.f32.xlu0 %v255
      %v257 = vpop.xlane.xlu0 %256
      %v258 = vsel %vm206, %v191, 0.0
      %259 = vadd.xlane.f32.xlu0 %v258
      %v260 = vpop.xlane.xlu0 %259
      %v261 = vsel %vm206, %v192, 0.0
      %262 = vadd.xlane.f32.xlu0 %v261
      %v263 = vpop.xlane.xlu0 %262
      %v264 = vsel %vm206, %v193, 0.0
      %265 = vadd.xlane.f32.xlu0 %v264
      %v266 = vpop.xlane.xlu0 %265
      %v267 = vsel %vm206, %v194, 0.0
      %268 = vadd.xlane.f32.xlu0 %v267
      %v269 = vpop.xlane.xlu0 %268
      %v270 = vsel %vm206, %v195, 0.0
      %271 = vadd.xlane.f32.xlu0 %v270
      %v272 = vpop.xlane.xlu0 %271
      %v273 = vsel %vm206, %v196, 0.0
      %274 = vadd.xlane.f32.xlu0 %v273
      %v275 = vpop.xlane.xlu0 %274
      %v276 = vsel %vm206, %v197, 0.0
      %277 = vadd.xlane.f32.xlu0 %v276
      %v278 = vpop.xlane.xlu0 %277
      %v279 = vsel %vm206, %v198, 0.0
      %280 = vadd.xlane.f32.xlu0 %v279
      %v281 = vpop.xlane.xlu0 %280
      %v282 = vsel %vm206, %v199, 0.0
      %283 = vadd.xlane.f32.xlu0 %v282
      %v284 = vpop.xlane.xlu0 %283
      %v285 = vsel %vm206, %v200, 0.0
      %286 = vadd.xlane.f32.xlu0 %v285
      %v287 = vpop.xlane.xlu0 %286
      %v288 = vsel %vm206, %v201, 0.0
      %289 = vadd.xlane.f32.xlu0 %v288
      %v290 = vpop.xlane.xlu0 %289
      %v291 = vsel %vm206, %v202, 0.0
      %292 = vadd.xlane.f32.xlu0 %v291
      %v293 = vpop.xlane.xlu0 %292
      %v294 = vsel %vm206, %v203, 0.0
      %295 = vadd.xlane.f32.xlu0 %v294
      %v296 = vpop.xlane.xlu0 %295
      %v297 = vsel %vm206, %v204, 0.0
      %298 = vadd.xlane.f32.xlu0 %v297
      %v299 = vpop.xlane.xlu0 %298
      %v300 = vsel %vm206, %v205, 0.0
      %301 = vadd.xlane.f32.xlu0 %v300
      %v302 = vpop.xlane.xlu0 %301
      %v303 = vmul.f32 %v209, 0.015625
      %v304 = vmul.f32 %v212, 0.015625
      %v305 = vmul.f32 %v215, 0.015625
      %v306 = vmul.f32 %v218, 0.015625
      %v307 = vmul.f32 %v221, 0.015625
      %v308 = vmul.f32 %v224, 0.015625
      %v309 = vmul.f32 %v227, 0.015625
      %v310 = vmul.f32 %v230, 0.015625
      %v311 = vmul.f32 %v233, 0.015625
      %v312 = vmul.f32 %v236, 0.015625
      %v313 = vmul.f32 %v239, 0.015625
      %v314 = vmul.f32 %v242, 0.015625
      %v315 = vmul.f32 %v245, 0.015625
      %v316 = vmul.f32 %v248, 0.015625
      %v317 = vmul.f32 %v251, 0.015625
      %v318 = vmul.f32 %v254, 0.015625
      %v319 = vmul.f32 %v257, 0.015625
      %v320 = vmul.f32 %v260, 0.015625
      %v321 = vmul.f32 %v263, 0.015625
      %v322 = vmul.f32 %v266, 0.015625
      %v323 = vmul.f32 %v269, 0.015625
      %v324 = vmul.f32 %v272, 0.015625
      %v325 = vmul.f32 %v275, 0.015625
      %v326 = vmul.f32 %v278, 0.015625
      %v327 = vmul.f32 %v281, 0.015625
      %v328 = vmul.f32 %v284, 0.015625
      %v329 = vmul.f32 %v287, 0.015625
      %v330 = vmul.f32 %v290, 0.015625
      %v331 = vmul.f32 %v293, 0.015625
      %v332 = vmul.f32 %v296, 0.015625
      %v333 = vmul.f32 %v299, 0.015625
      %v334 = vmul.f32 %v302, 0.015625
      %v335 = vsub.f32 %v174, %v303
      %v336 = vsub.f32 %v175, %v304
      %v337 = vsub.f32 %v176, %v305
      %v338 = vsub.f32 %v177, %v306
      %v339 = vsub.f32 %v178, %v307
      %v340 = vsub.f32 %v179, %v308
      %v341 = vsub.f32 %v180, %v309
      %v342 = vsub.f32 %v181, %v310
      %v343 = vsub.f32 %v182, %v311
      %v344 = vsub.f32 %v183, %v312
      %v345 = vsub.f32 %v184, %v313
      %v346 = vsub.f32 %v185, %v314
      %v347 = vsub.f32 %v186, %v315
      %v348 = vsub.f32 %v187, %v316
      %v349 = vsub.f32 %v188, %v317
      %v350 = vsub.f32 %v189, %v318
      %v351 = vsub.f32 %v190, %v319
      %v352 = vsub.f32 %v191, %v320
      %v353 = vsub.f32 %v192, %v321
      %v354 = vsub.f32 %v193, %v322
      %v355 = vsub.f32 %v194, %v323
      %v356 = vsub.f32 %v195, %v324
      %v357 = vsub.f32 %v196, %v325
      %v358 = vsub.f32 %v197, %v326
      %v359 = vsub.f32 %v198, %v327
      %v360 = vsub.f32 %v199, %v328
      %v361 = vsub.f32 %v200, %v329
      %v362 = vsub.f32 %v201, %v330
      %v363 = vsub.f32 %v202, %v331
      %v364 = vsub.f32 %v203, %v332
      %v365 = vsub.f32 %v204, %v333
      %v366 = vsub.f32 %v205, %v334
      %v367 = vmul.f32 %v335, %v335
      %v368 = vmul.f32 %v336, %v336
      %v369 = vmul.f32 %v337, %v337
      %v370 = vmul.f32 %v338, %v338
      %v371 = vmul.f32 %v339, %v339
      %v372 = vmul.f32 %v340, %v340
      %v373 = vmul.f32 %v341, %v341
      %v374 = vmul.f32 %v342, %v342
      %v375 = vmul.f32 %v343, %v343
      %v376 = vmul.f32 %v344, %v344
      %v377 = vmul.f32 %v345, %v345
      %v378 = vmul.f32 %v346, %v346
      %v379 = vmul.f32 %v347, %v347
      %v380 = vmul.f32 %v348, %v348
      %v381 = vmul.f32 %v349, %v349
      %v382 = vmul.f32 %v350, %v350
      %v383 = vmul.f32 %v351, %v351
      %v384 = vmul.f32 %v352, %v352
      %v385 = vmul.f32 %v353, %v353
      %v386 = vmul.f32 %v354, %v354
      %v387 = vmul.f32 %v355, %v355
      %v388 = vmul.f32 %v356, %v356
      %v389 = vmul.f32 %v357, %v357
      %v390 = vmul.f32 %v358, %v358
      %v391 = vmul.f32 %v359, %v359
      %v392 = vmul.f32 %v360, %v360
      %v393 = vmul.f32 %v361, %v361
      %v394 = vmul.f32 %v362, %v362
      %v395 = vmul.f32 %v363, %v363
      %v396 = vmul.f32 %v364, %v364
      %v397 = vmul.f32 %v365, %v365
      %v398 = vmul.f32 %v366, %v366
      %v399 = vsel %vm206, %v367, 0.0
      %400 = vadd.xlane.f32.xlu0 %v399
      %v401 = vpop.xlane.xlu0 %400
      %v402 = vsel %vm206, %v368, 0.0
      %403 = vadd.xlane.f32.xlu0 %v402
      %v404 = vpop.xlane.xlu0 %403
      %v405 = vsel %vm206, %v369, 0.0
      %406 = vadd.xlane.f32.xlu0 %v405
      %v407 = vpop.xlane.xlu0 %406
      %v408 = vsel %vm206, %v370, 0.0
      %409 = vadd.xlane.f32.xlu0 %v408
      %v410 = vpop.xlane.xlu0 %409
      %v411 = vsel %vm206, %v371, 0.0
      %412 = vadd.xlane.f32.xlu0 %v411
      %v413 = vpop.xlane.xlu0 %412
      %v414 = vsel %vm206, %v372, 0.0
      %415 = vadd.xlane.f32.xlu0 %v414
      %v416 = vpop.xlane.xlu0 %415
      %v417 = vsel %vm206, %v373, 0.0
      %418 = vadd.xlane.f32.xlu0 %v417
      %v419 = vpop.xlane.xlu0 %418
      %v420 = vsel %vm206, %v374, 0.0
      %421 = vadd.xlane.f32.xlu0 %v420
      %v422 = vpop.xlane.xlu0 %421
      %v423 = vsel %vm206, %v375, 0.0
      %424 = vadd.xlane.f32.xlu0 %v423
      %v425 = vpop.xlane.xlu0 %424
      %v426 = vsel %vm206, %v376, 0.0
      %427 = vadd.xlane.f32.xlu0 %v426
      %v428 = vpop.xlane.xlu0 %427
      %v429 = vsel %vm206, %v377, 0.0
      %430 = vadd.xlane.f32.xlu0 %v429
      %v431 = vpop.xlane.xlu0 %430
      %v432 = vsel %vm206, %v378, 0.0
      %433 = vadd.xlane.f32.xlu0 %v432
      %v434 = vpop.xlane.xlu0 %433
      %v435 = vsel %vm206, %v379, 0.0
      %436 = vadd.xlane.f32.xlu0 %v435
      %v437 = vpop.xlane.xlu0 %436
      %v438 = vsel %vm206, %v380, 0.0
      %439 = vadd.xlane.f32.xlu0 %v438
      %v440 = vpop.xlane.xlu0 %439
      %v441 = vsel %vm206, %v381, 0.0
      %442 = vadd.xlane.f32.xlu0 %v441
      %v443 = vpop.xlane.xlu0 %442
      %v444 = vsel %vm206, %v382, 0.0
      %445 = vadd.xlane.f32.xlu0 %v444
      %v446 = vpop.xlane.xlu0 %445
      %v447 = vsel %vm206, %v383, 0.0
      %448 = vadd.xlane.f32.xlu0 %v447
      %v449 = vpop.xlane.xlu0 %448
      %v450 = vsel %vm206, %v384, 0.0
      %451 = vadd.xlane.f32.xlu0 %v450
      %v452 = vpop.xlane.xlu0 %451
      %v453 = vsel %vm206, %v385, 0.0
      %454 = vadd.xlane.f32.xlu0 %v453
      %v455 = vpop.xlane.xlu0 %454
      %v456 = vsel %vm206, %v386, 0.0
      %457 = vadd.xlane.f32.xlu0 %v456
      %v458 = vpop.xlane.xlu0 %457
      %v459 = vsel %vm206, %v387, 0.0
      %460 = vadd.xlane.f32.xlu0 %v459
      %v461 = vpop.xlane.xlu0 %460
      %v462 = vsel %vm206, %v388, 0.0
      %463 = vadd.xlane.f32.xlu0 %v462
      %v464 = vpop.xlane.xlu0 %463
      %v465 = vsel %vm206, %v389, 0.0
      %466 = vadd.xlane.f32.xlu0 %v465
      %v467 = vpop.xlane.xlu0 %466
      %v468 = vsel %vm206, %v390, 0.0
      %469 = vadd.xlane.f32.xlu0 %v468
      %v470 = vpop.xlane.xlu0 %469
      %v471 = vsel %vm206, %v391, 0.0
      %472 = vadd.xlane.f32.xlu0 %v471
      %v473 = vpop.xlane.xlu0 %472
      %v474 = vsel %vm206, %v392, 0.0
      %475 = vadd.xlane.f32.xlu0 %v474
      %v476 = vpop.xlane.xlu0 %475
      %v477 = vsel %vm206, %v393, 0.0
      %478 = vadd.xlane.f32.xlu0 %v477
      %v479 = vpop.xlane.xlu0 %478
      %v480 = vsel %vm206, %v394, 0.0
      %481 = vadd.xlane.f32.xlu0 %v480
      %v482 = vpop.xlane.xlu0 %481
      %v483 = vsel %vm206, %v395, 0.0
      %484 = vadd.xlane.f32.xlu0 %v483
      %v485 = vpop.xlane.xlu0 %484
      %v486 = vsel %vm206, %v396, 0.0
      %487 = vadd.xlane.f32.xlu0 %v486
      %v488 = vpop.xlane.xlu0 %487
      %v489 = vsel %vm206, %v397, 0.0
      %490 = vadd.xlane.f32.xlu0 %v489
      %v491 = vpop.xlane.xlu0 %490
      %v492 = vsel %vm206, %v398, 0.0
      %493 = vadd.xlane.f32.xlu0 %v492
      %v494 = vpop.xlane.xlu0 %493
      %v495 = vmul.f32 %v401, 0.015625
      %v496 = vmul.f32 %v404, 0.015625
      %v497 = vmul.f32 %v407, 0.015625
      %v498 = vmul.f32 %v410, 0.015625
      %v499 = vmul.f32 %v413, 0.015625
      %v500 = vmul.f32 %v416, 0.015625
      %v501 = vmul.f32 %v419, 0.015625
      %v502 = vmul.f32 %v422, 0.015625
      %v503 = vmul.f32 %v425, 0.015625
      %v504 = vmul.f32 %v428, 0.015625
      %v505 = vmul.f32 %v431, 0.015625
      %v506 = vmul.f32 %v434, 0.015625
      %v507 = vmul.f32 %v437, 0.015625
      %v508 = vmul.f32 %v440, 0.015625
      %v509 = vmul.f32 %v443, 0.015625
      %v510 = vmul.f32 %v446, 0.015625
      %v511 = vmul.f32 %v449, 0.015625
      %v512 = vmul.f32 %v452, 0.015625
      %v513 = vmul.f32 %v455, 0.015625
      %v514 = vmul.f32 %v458, 0.015625
      %v515 = vmul.f32 %v461, 0.015625
      %v516 = vmul.f32 %v464, 0.015625
      %v517 = vmul.f32 %v467, 0.015625
      %v518 = vmul.f32 %v470, 0.015625
      %v519 = vmul.f32 %v473, 0.015625
      %v520 = vmul.f32 %v476, 0.015625
      %v521 = vmul.f32 %v479, 0.015625
      %v522 = vmul.f32 %v482, 0.015625
      %v523 = vmul.f32 %v485, 0.015625
      %v524 = vmul.f32 %v488, 0.015625
      %v525 = vmul.f32 %v491, 0.015625
      %v526 = vmul.f32 %v494, 0.015625
      %v527 = vadd.f32 %v495, 1e-05
      %v528 = vadd.f32 %v496, 1e-05
      %v529 = vadd.f32 %v497, 1e-05
      %v530 = vadd.f32 %v498, 1e-05
      %v531 = vadd.f32 %v499, 1e-05
      %v532 = vadd.f32 %v500, 1e-05
      %v533 = vadd.f32 %v501, 1e-05
      %v534 = vadd.f32 %v502, 1e-05
      %v535 = vadd.f32 %v503, 1e-05
      %v536 = vadd.f32 %v504, 1e-05
      %v537 = vadd.f32 %v505, 1e-05
      %v538 = vadd.f32 %v506, 1e-05
      %v539 = vadd.f32 %v507, 1e-05
      %v540 = vadd.f32 %v508, 1e-05
      %v541 = vadd.f32 %v509, 1e-05
      %v542 = vadd.f32 %v510, 1e-05
      %v543 = vadd.f32 %v511, 1e-05
      %v544 = vadd.f32 %v512, 1e-05
      %v545 = vadd.f32 %v513, 1e-05
      %v546 = vadd.f32 %v514, 1e-05
      %v547 = vadd.f32 %v515, 1e-05
      %v548 = vadd.f32 %v516, 1e-05
      %v549 = vadd.f32 %v517, 1e-05
      %v550 = vadd.f32 %v518, 1e-05
      %v551 = vadd.f32 %v519, 1e-05
      %v552 = vadd.f32 %v520, 1e-05
      %v553 = vadd.f32 %v521, 1e-05
      %v554 = vadd.f32 %v522, 1e-05
      %v555 = vadd.f32 %v523, 1e-05
      %v556 = vadd.f32 %v524, 1e-05
      %v557 = vadd.f32 %v525, 1e-05
      %v558 = vadd.f32 %v526, 1e-05
      %v559 = vrsqrt.pop %v527
      %v560 = vmul.f32 %v559, %v527
      %v561 = vmul.f32 %v560, %v559
      %v562 = vmul.f32 0.5, %v561
      %v563 = vsub.f32 1.5, %v562
      %v564 = vmul.f32 %v559, %v563
      %vm565 = vweird.f32 %v527
      %vm566 = vweird.f32 %v559
      %vm567 = vmor %vm565, %vm566
      %v568 = vsel %vm567, %v559, %v564
      %v569 = vrsqrt.pop %v528
      %v570 = vmul.f32 %v569, %v528
      %v571 = vmul.f32 %v570, %v569
      %v572 = vmul.f32 0.5, %v571
      %v573 = vsub.f32 1.5, %v572
      %v574 = vmul.f32 %v569, %v573
      %vm575 = vweird.f32 %v528
      %vm576 = vweird.f32 %v569
      %vm577 = vmor %vm575, %vm576
      %v578 = vsel %vm577, %v569, %v574
      %v579 = vrsqrt.pop %v529
      %v580 = vmul.f32 %v579, %v529
      %v581 = vmul.f32 %v580, %v579
      %v582 = vmul.f32 0.5, %v581
      %v583 = vsub.f32 1.5, %v582
      %v584 = vmul.f32 %v579, %v583
      %vm585 = vweird.f32 %v529
      %vm586 = vweird.f32 %v579
      %vm587 = vmor %vm585, %vm586
      %v588 = vsel %vm587, %v579, %v584
      %v589 = vrsqrt.pop %v530
      %v590 = vmul.f32 %v589, %v530
      %v591 = vmul.f32 %v590, %v589
      %v592 = vmul.f32 0.5, %v591
      %v593 = vsub.f32 1.5, %v592
      %v594 = vmul.f32 %v589, %v593
      %vm595 = vweird.f32 %v530
      %vm596 = vweird.f32 %v589
      %vm597 = vmor %vm595, %vm596
      %v598 = vsel %vm597, %v589, %v594
      %v599 = vrsqrt.pop %v531
      %v600 = vmul.f32 %v599, %v531
      %v601 = vmul.f32 %v600, %v599
      %v602 = vmul.f32 0.5, %v601
      %v603 = vsub.f32 1.5, %v602
      %v604 = vmul.f32 %v599, %v603
      %vm605 = vweird.f32 %v531
      %vm606 = vweird.f32 %v599
      %vm607 = vmor %vm605, %vm606
      %v608 = vsel %vm607, %v599, %v604
      %v609 = vrsqrt.pop %v532
      %v610 = vmul.f32 %v609, %v532
      %v611 = vmul.f32 %v610, %v609
      %v612 = vmul.f32 0.5, %v611
      %v613 = vsub.f32 1.5, %v612
      %v614 = vmul.f32 %v609, %v613
      %vm615 = vweird.f32 %v532
      %vm616 = vweird.f32 %v609
      %vm617 = vmor %vm615, %vm616
      %v618 = vsel %vm617, %v609, %v614
      %v619 = vrsqrt.pop %v533
      %v620 = vmul.f32 %v619, %v533
      %v621 = vmul.f32 %v620, %v619
      %v622 = vmul.f32 0.5, %v621
      %v623 = vsub.f32 1.5, %v622
      %v624 = vmul.f32 %v619, %v623
      %vm625 = vweird.f32 %v533
      %vm626 = vweird.f32 %v619
      %vm627 = vmor %vm625, %vm626
      %v628 = vsel %vm627, %v619, %v624
      %v629 = vrsqrt.pop %v534
      %v630 = vmul.f32 %v629, %v534
      %v631 = vmul.f32 %v630, %v629
      %v632 = vmul.f32 0.5, %v631
      %v633 = vsub.f32 1.5, %v632
      %v634 = vmul.f32 %v629, %v633
      %vm635 = vweird.f32 %v534
      %vm636 = vweird.f32 %v629
      %vm637 = vmor %vm635, %vm636
      %v638 = vsel %vm637, %v629, %v634
      %v639 = vrsqrt.pop %v535
      %v640 = vmul.f32 %v639, %v535
      %v641 = vmul.f32 %v640, %v639
      %v642 = vmul.f32 0.5, %v641
      %v643 = vsub.f32 1.5, %v642
      %v644 = vmul.f32 %v639, %v643
      %vm645 = vweird.f32 %v535
      %vm646 = vweird.f32 %v639
      %vm647 = vmor %vm645, %vm646
      %v648 = vsel %vm647, %v639, %v644
      %v649 = vrsqrt.pop %v536
      %v650 = vmul.f32 %v649, %v536
      %v651 = vmul.f32 %v650, %v649
      %v652 = vmul.f32 0.5, %v651
      %v653 = vsub.f32 1.5, %v652
      %v654 = vmul.f32 %v649, %v653
      %vm655 = vweird.f32 %v536
      %vm656 = vweird.f32 %v649
      %vm657 = vmor %vm655, %vm656
      %v658 = vsel %vm657, %v649, %v654
      %v659 = vrsqrt.pop %v537
      %v660 = vmul.f32 %v659, %v537
      %v661 = vmul.f32 %v660, %v659
      %v662 = vmul.f32 0.5, %v661
      %v663 = vsub.f32 1.5, %v662
      %v664 = vmul.f32 %v659, %v663
      %vm665 = vweird.f32 %v537
      %vm666 = vweird.f32 %v659
      %vm667 = vmor %vm665, %vm666
      %v668 = vsel %vm667, %v659, %v664
      %v669 = vrsqrt.pop %v538
      %v670 = vmul.f32 %v669, %v538
      %v671 = vmul.f32 %v670, %v669
      %v672 = vmul.f32 0.5, %v671
      %v673 = vsub.f32 1.5, %v672
      %v674 = vmul.f32 %v669, %v673
      %vm675 = vweird.f32 %v538
      %vm676 = vweird.f32 %v669
      %vm677 = vmor %vm675, %vm676
      %v678 = vsel %vm677, %v669, %v674
      %v679 = vrsqrt.pop %v539
      %v680 = vmul.f32 %v679, %v539
      %v681 = vmul.f32 %v680, %v679
      %v682 = vmul.f32 0.5, %v681
      %v683 = vsub.f32 1.5, %v682
      %v684 = vmul.f32 %v679, %v683
      %vm685 = vweird.f32 %v539
      %vm686 = vweird.f32 %v679
      %vm687 = vmor %vm685, %vm686
      %v688 = vsel %vm687, %v679, %v684
      %v689 = vrsqrt.pop %v540
      %v690 = vmul.f32 %v689, %v540
      %v691 = vmul.f32 %v690, %v689
      %v692 = vmul.f32 0.5, %v691
      %v693 = vsub.f32 1.5, %v692
      %v694 = vmul.f32 %v689, %v693
      %vm695 = vweird.f32 %v540
      %vm696 = vweird.f32 %v689
      %vm697 = vmor %vm695, %vm696
      %v698 = vsel %vm697, %v689, %v694
      %v699 = vrsqrt.pop %v541
      %v700 = vmul.f32 %v699, %v541
      %v701 = vmul.f32 %v700, %v699
      %v702 = vmul.f32 0.5, %v701
      %v703 = vsub.f32 1.5, %v702
      %v704 = vmul.f32 %v699, %v703
      %vm705 = vweird.f32 %v541
      %vm706 = vweird.f32 %v699
      %vm707 = vmor %vm705, %vm706
      %v708 = vsel %vm707, %v699, %v704
      %v709 = vrsqrt.pop %v542
      %v710 = vmul.f32 %v709, %v542
      %v711 = vmul.f32 %v710, %v709
      %v712 = vmul.f32 0.5, %v711
      %v713 = vsub.f32 1.5, %v712
      %v714 = vmul.f32 %v709, %v713
      %vm715 = vweird.f32 %v542
      %vm716 = vweird.f32 %v709
      %vm717 = vmor %vm715, %vm716
      %v718 = vsel %vm717, %v709, %v714
      %v719 = vrsqrt.pop %v543
      %v720 = vmul.f32 %v719, %v543
      %v721 = vmul.f32 %v720, %v719
      %v722 = vmul.f32 0.5, %v721
      %v723 = vsub.f32 1.5, %v722
      %v724 = vmul.f32 %v719, %v723
      %vm725 = vweird.f32 %v543
      %vm726 = vweird.f32 %v719
      %vm727 = vmor %vm725, %vm726
      %v728 = vsel %vm727, %v719, %v724
      %v729 = vrsqrt.pop %v544
      %v730 = vmul.f32 %v729, %v544
      %v731 = vmul.f32 %v730, %v729
      %v732 = vmul.f32 0.5, %v731
      %v733 = vsub.f32 1.5, %v732
      %v734 = vmul.f32 %v729, %v733
      %vm735 = vweird.f32 %v544
      %vm736 = vweird.f32 %v729
      %vm737 = vmor %vm735, %vm736
      %v738 = vsel %vm737, %v729, %v734
      %v739 = vrsqrt.pop %v545
      %v740 = vmul.f32 %v739, %v545
      %v741 = vmul.f32 %v740, %v739
      %v742 = vmul.f32 0.5, %v741
      %v743 = vsub.f32 1.5, %v742
      %v744 = vmul.f32 %v739, %v743
      %vm745 = vweird.f32 %v545
      %vm746 = vweird.f32 %v739
      %vm747 = vmor %vm745, %vm746
      %v748 = vsel %vm747, %v739, %v744
      %v749 = vrsqrt.pop %v546
      %v750 = vmul.f32 %v749, %v546
      %v751 = vmul.f32 %v750, %v749
      %v752 = vmul.f32 0.5, %v751
      %v753 = vsub.f32 1.5, %v752
      %v754 = vmul.f32 %v749, %v753
      %vm755 = vweird.f32 %v546
      %vm756 = vweird.f32 %v749
      %vm757 = vmor %vm755, %vm756
      %v758 = vsel %vm757, %v749, %v754
      %v759 = vrsqrt.pop %v547
      %v760 = vmul.f32 %v759, %v547
      %v761 = vmul.f32 %v760, %v759
      %v762 = vmul.f32 0.5, %v761
      %v763 = vsub.f32 1.5, %v762
      %v764 = vmul.f32 %v759, %v763
      %vm765 = vweird.f32 %v547
      %vm766 = vweird.f32 %v759
      %vm767 = vmor %vm765, %vm766
      %v768 = vsel %vm767, %v759, %v764
      %v769 = vrsqrt.pop %v548
      %v770 = vmul.f32 %v769, %v548
      %v771 = vmul.f32 %v770, %v769
      %v772 = vmul.f32 0.5, %v771
      %v773 = vsub.f32 1.5, %v772
      %v774 = vmul.f32 %v769, %v773
      %vm775 = vweird.f32 %v548
      %vm776 = vweird.f32 %v769
      %vm777 = vmor %vm775, %vm776
      %v778 = vsel %vm777, %v769, %v774
      %v779 = vrsqrt.pop %v549
      %v780 = vmul.f32 %v779, %v549
      %v781 = vmul.f32 %v780, %v779
      %v782 = vmul.f32 0.5, %v781
      %v783 = vsub.f32 1.5, %v782
      %v784 = vmul.f32 %v779, %v783
      %vm785 = vweird.f32 %v549
      %vm786 = vweird.f32 %v779
      %vm787 = vmor %vm785, %vm786
      %v788 = vsel %vm787, %v779, %v784
      %v789 = vrsqrt.pop %v550
      %v790 = vmul.f32 %v789, %v550
      %v791 = vmul.f32 %v790, %v789
      %v792 = vmul.f32 0.5, %v791
      %v793 = vsub.f32 1.5, %v792
      %v794 = vmul.f32 %v789, %v793
      %vm795 = vweird.f32 %v550
      %vm796 = vweird.f32 %v789
      %vm797 = vmor %vm795, %vm796
      %v798 = vsel %vm797, %v789, %v794
      %v799 = vrsqrt.pop %v551
      %v800 = vmul.f32 %v799, %v551
      %v801 = vmul.f32 %v800, %v799
      %v802 = vmul.f32 0.5, %v801
      %v803 = vsub.f32 1.5, %v802
      %v804 = vmul.f32 %v799, %v803
      %vm805 = vweird.f32 %v551
      %vm806 = vweird.f32 %v799
      %vm807 = vmor %vm805, %vm806
      %v808 = vsel %vm807, %v799, %v804
      %v809 = vrsqrt.pop %v552
      %v810 = vmul.f32 %v809, %v552
      %v811 = vmul.f32 %v810, %v809
      %v812 = vmul.f32 0.5, %v811
      %v813 = vsub.f32 1.5, %v812
      %v814 = vmul.f32 %v809, %v813
      %vm815 = vweird.f32 %v552
      %vm816 = vweird.f32 %v809
      %vm817 = vmor %vm815, %vm816
      %v818 = vsel %vm817, %v809, %v814
      %v819 = vrsqrt.pop %v553
      %v820 = vmul.f32 %v819, %v553
      %v821 = vmul.f32 %v820, %v819
      %v822 = vmul.f32 0.5, %v821
      %v823 = vsub.f32 1.5, %v822
      %v824 = vmul.f32 %v819, %v823
      %vm825 = vweird.f32 %v553
      %vm826 = vweird.f32 %v819
      %vm827 = vmor %vm825, %vm826
      %v828 = vsel %vm827, %v819, %v824
      %v829 = vrsqrt.pop %v554
      %v830 = vmul.f32 %v829, %v554
      %v831 = vmul.f32 %v830, %v829
      %v832 = vmul.f32 0.5, %v831
      %v833 = vsub.f32 1.5, %v832
      %v834 = vmul.f32 %v829, %v833
      %vm835 = vweird.f32 %v554
      %vm836 = vweird.f32 %v829
      %vm837 = vmor %vm835, %vm836
      %v838 = vsel %vm837, %v829, %v834
      %v839 = vrsqrt.pop %v555
      %v840 = vmul.f32 %v839, %v555
      %v841 = vmul.f32 %v840, %v839
      %v842 = vmul.f32 0.5, %v841
      %v843 = vsub.f32 1.5, %v842
      %v844 = vmul.f32 %v839, %v843
      %vm845 = vweird.f32 %v555
      %vm846 = vweird.f32 %v839
      %vm847 = vmor %vm845, %vm846
      %v848 = vsel %vm847, %v839, %v844
      %v849 = vrsqrt.pop %v556
      %v850 = vmul.f32 %v849, %v556
      %v851 = vmul.f32 %v850, %v849
      %v852 = vmul.f32 0.5, %v851
      %v853 = vsub.f32 1.5, %v852
      %v854 = vmul.f32 %v849, %v853
      %vm855 = vweird.f32 %v556
      %vm856 = vweird.f32 %v849
      %vm857 = vmor %vm855, %vm856
      %v858 = vsel %vm857, %v849, %v854
      %v859 = vrsqrt.pop %v557
      %v860 = vmul.f32 %v859, %v557
      %v861 = vmul.f32 %v860, %v859
      %v862 = vmul.f32 0.5, %v861
      %v863 = vsub.f32 1.5, %v862
      %v864 = vmul.f32 %v859, %v863
      %vm865 = vweird.f32 %v557
      %vm866 = vweird.f32 %v859
      %vm867 = vmor %vm865, %vm866
      %v868 = vsel %vm867, %v859, %v864
      %v869 = vrsqrt.pop %v558
      %v870 = vmul.f32 %v869, %v558
      %v871 = vmul.f32 %v870, %v869
      %v872 = vmul.f32 0.5, %v871
      %v873 = vsub.f32 1.5, %v872
      %v874 = vmul.f32 %v869, %v873
      %vm875 = vweird.f32 %v558
      %vm876 = vweird.f32 %v869
      %vm877 = vmor %vm875, %vm876
      %v878 = vsel %vm877, %v869, %v874
      %v879 = vld [vmem:[%s1] sm:$0x1]
      %v880 = vld [vmem:[%s2] sm:$0x1]
      %v881 = vmul.f32 %v335, %v568
      %v882 = vmul.f32 %v336, %v578
      %v883 = vmul.f32 %v337, %v588
      %v884 = vmul.f32 %v338, %v598
      %v885 = vmul.f32 %v339, %v608
      %v886 = vmul.f32 %v340, %v618
      %v887 = vmul.f32 %v341, %v628
      %v888 = vmul.f32 %v342, %v638
      %v889 = vmul.f32 %v343, %v648
      %v890 = vmul.f32 %v344, %v658
      %v891 = vmul.f32 %v345, %v668
      %v892 = vmul.f32 %v346, %v678
      %v893 = vmul.f32 %v347, %v688
      %v894 = vmul.f32 %v348, %v698
      %v895 = vmul.f32 %v349, %v708
      %v896 = vmul.f32 %v350, %v718
      %v897 = vmul.f32 %v351, %v728
      %v898 = vmul.f32 %v352, %v738
      %v899 = vmul.f32 %v353, %v748
      %v900 = vmul.f32 %v354, %v758
      %v901 = vmul.f32 %v355, %v768
      %v902 = vmul.f32 %v356, %v778
      %v903 = vmul.f32 %v357, %v788
      %v904 = vmul.f32 %v358, %v798
      %v905 = vmul.f32 %v359, %v808
      %v906 = vmul.f32 %v360, %v818
      %v907 = vmul.f32 %v361, %v828
      %v908 = vmul.f32 %v362, %v838
      %v909 = vmul.f32 %v363, %v848
      %v910 = vmul.f32 %v364, %v858
      %v911 = vmul.f32 %v365, %v868
      %v912 = vmul.f32 %v366, %v878
      %v914 = vperm.slane %v879, 0
      %v916 = vmul.f32 %v881, %v914
      %v917 = vmul.f32 %v882, %v914
      %v918 = vmul.f32 %v883, %v914
      %v919 = vmul.f32 %v884, %v914
      %v920 = vmul.f32 %v885, %v914
      %v921 = vmul.f32 %v886, %v914
      %v922 = vmul.f32 %v887, %v914
      %v923 = vmul.f32 %v888, %v914
      %v924 = vmul.f32 %v889, %v914
      %v925 = vmul.f32 %v890, %v914
      %v926 = vmul.f32 %v891, %v914
      %v927 = vmul.f32 %v892, %v914
      %v928 = vmul.f32 %v893, %v914
      %v929 = vmul.f32 %v894, %v914
      %v930 = vmul.f32 %v895, %v914
      %v931 = vmul.f32 %v896, %v914
      %v932 = vmul.f32 %v897, %v914
      %v933 = vmul.f32 %v898, %v914
      %v934 = vmul.f32 %v899, %v914
      %v935 = vmul.f32 %v900, %v914
      %v936 = vmul.f32 %v901, %v914
      %v937 = vmul.f32 %v902, %v914
      %v938 = vmul.f32 %v903, %v914
      %v939 = vmul.f32 %v904, %v914
      %v940 = vmul.f32 %v905, %v914
      %v941 = vmul.f32 %v906, %v914
      %v942 = vmul.f32 %v907, %v914
      %v943 = vmul.f32 %v908, %v914
      %v944 = vmul.f32 %v909, %v914
      %v945 = vmul.f32 %v910, %v914
      %v946 = vmul.f32 %v911, %v914
      %v947 = vmul.f32 %v912, %v914
      %v949 = vperm.slane %v880, 0
      %v951 = vadd.f32 %v916, %v949
      %v952 = vadd.f32 %v917, %v949
      %v953 = vadd.f32 %v918, %v949
      %v954 = vadd.f32 %v919, %v949
      %v955 = vadd.f32 %v920, %v949
      %v956 = vadd.f32 %v921, %v949
      %v957 = vadd.f32 %v922, %v949
      %v958 = vadd.f32 %v923, %v949
      %v959 = vadd.f32 %v924, %v949
      %v960 = vadd.f32 %v925, %v949
      %v961 = vadd.f32 %v926, %v949
      %v962 = vadd.f32 %v927, %v949
      %v963 = vadd.f32 %v928, %v949
      %v964 = vadd.f32 %v929, %v949
      %v965 = vadd.f32 %v930, %v949
      %v966 = vadd.f32 %v931, %v949
      %v967 = vadd.f32 %v932, %v949
      %v968 = vadd.f32 %v933, %v949
      %v969 = vadd.f32 %v934, %v949
      %v970 = vadd.f32 %v935, %v949
      %v971 = vadd.f32 %v936, %v949
      %v972 = vadd.f32 %v937, %v949
      %v973 = vadd.f32 %v938, %v949
      %v974 = vadd.f32 %v939, %v949
      %v975 = vadd.f32 %v940, %v949
      %v976 = vadd.f32 %v941, %v949
      %v977 = vadd.f32 %v942, %v949
      %v978 = vadd.f32 %v943, %v949
      %v979 = vadd.f32 %v944, %v949
      %v980 = vadd.f32 %v945, %v949
      %v981 = vadd.f32 %v946, %v949
      %v982 = vadd.f32 %v947, %v949
      %983 = vst.msk [vmem:[%s172] sm:$0xff] %vm206, %v951
      %984 = vst.msk [vmem:[%s172 + $0x8] sm:$0xff] %vm206, %v952
      %985 = vst.msk [vmem:[%s172 + $0x10] sm:$0xff] %vm206, %v953
      %986 = vst.msk [vmem:[%s172 + $0x18] sm:$0xff] %vm206, %v954
      %987 = vst.msk [vmem:[%s172 + $0x20] sm:$0xff] %vm206, %v955
      %988 = vst.msk [vmem:[%s172 + $0x28] sm:$0xff] %vm206, %v956
      %989 = vst.msk [vmem:[%s172 + $0x30] sm:$0xff] %vm206, %v957
      %990 = vst.msk [vmem:[%s172 + $0x38] sm:$0xff] %vm206, %v958
      %991 = vst.msk [vmem:[%s172 + $0x40] sm:$0xff] %vm206, %v959
      %992 = vst.msk [vmem:[%s172 + $0x48] sm:$0xff] %vm206, %v960
      %993 = vst.msk [vmem:[%s172 + $0x50] sm:$0xff] %vm206, %v961
      %994 = vst.msk [vmem:[%s172 + $0x58] sm:$0xff] %vm206, %v962
      %995 = vst.msk [vmem:[%s172 + $0x60] sm:$0xff] %vm206, %v963
      %996 = vst.msk [vmem:[%s172 + $0x68] sm:$0xff] %vm206, %v964
      %997 = vst.msk [vmem:[%s172 + $0x70] sm:$0xff] %vm206, %v965
      %998 = vst.msk [vmem:[%s172 + $0x78] sm:$0xff] %vm206, %v966
      %999 = vst.msk [vmem:[%s172 + $0x80] sm:$0xff] %vm206, %v967
      %1000 = vst.msk [vmem:[%s172 + $0x88] sm:$0xff] %vm206, %v968
      %1001 = vst.msk [vmem:[%s172 + $0x90] sm:$0xff] %vm206, %v969
      %1002 = vst.msk [vmem:[%s172 + $0x98] sm:$0xff] %vm206, %v970
      %1003 = vst.msk [vmem:[%s172 + $0xa0] sm:$0xff] %vm206, %v971
      %1004 = vst.msk [vmem:[%s172 + $0xa8] sm:$0xff] %vm206, %v972
      %1005 = vst.msk [vmem:[%s172 + $0xb0] sm:$0xff] %vm206, %v973
      %1006 = vst.msk [vmem:[%s172 + $0xb8] sm:$0xff] %vm206, %v974
      %1007 = vst.msk [vmem:[%s172 + $0xc0] sm:$0xff] %vm206, %v975
      %1008 = vst.msk [vmem:[%s172 + $0xc8] sm:$0xff] %vm206, %v976
      %1009 = vst.msk [vmem:[%s172 + $0xd0] sm:$0xff] %vm206, %v977
      %1010 = vst.msk [vmem:[%s172 + $0xd8] sm:$0xff] %vm206, %v978
      %1011 = vst.msk [vmem:[%s172 + $0xe0] sm:$0xff] %vm206, %v979
      %1012 = vst.msk [vmem:[%s172 + $0xe8] sm:$0xff] %vm206, %v980
      %1013 = vst.msk [vmem:[%s172 + $0xf0] sm:$0xff] %vm206, %v981
      %1014 = vst.msk [vmem:[%s172 + $0xf8] sm:$0xff] %vm206, %v982
      %s1015 = smul.u32 32, %s14
      %p1016 = scmp.lt.s32.totalorder %s1015, 63
      %s1017 = scalar_select %p1016, %s1015, 63
      %s1018 = smul.addr %s1017, 8
      %s1019 = scalar_lea.vmem %s3, %s1018
      // Predicated region
      $region33: #{tpu_custom_call.1} parent=31 // pred_check
        %p1020 = pneg %p100
      $region34: #{tpu_custom_call.1} parent=31 // pred_check_branch
        %1022 = sbr.rel (%p1020) target = $region36
      $region35: #{tpu_custom_call.1} parent=31 // pred_region
        %s1023 = smul.u32 32, %s14
      $region36: #{tpu_custom_call.1} parent=31 // pred_fallthru
        _
    $region32: #{tpu_custom_call.1} parent=5 // pred_fallthru
      _
    %p1024 = scmp.le.s32.totalorder 2, %s9
    // Predicated region
    $region37: #{tpu_custom_call.1} parent=5 // pred_check
      %p1025 = pneg %p1024
    $region38: #{tpu_custom_call.1} parent=5 // pred_check_branch
      %1027 = sbr.rel (%p1025) target = $region40
    $region39: #{tpu_custom_call.1} parent=5 // pred_region
      %s1028 = ssub.s32 %s9, 2
      // Predicated region
      $region41: #{tpu_custom_call.1} parent=39 // pred_check
        %p1029 = pneg %p106
      $region42: #{tpu_custom_call.1} parent=39 // pred_check_branch
        %1031 = sbr.rel (%p1029) target = $region44
      $region43: #{tpu_custom_call.1} parent=39 // pred_region
        %s1032 = smul.u32 32, %s15
        %p1033 = scmp.lt.s32.totalorder %s1032, 63
        %s1034 = scalar_select %p1033, %s1032, 63
        %s1035 = smul.addr %s1034, 8
        %s1036 = scalar_lea.vmem %s3, %s1035
      $region44: #{tpu_custom_call.1} parent=39 // pred_fallthru
        _
    $region40: #{tpu_custom_call.1} parent=5 // pred_fallthru
      _
  $region6: #{tpu_custom_call.1} parent=0 // loop_footer
    %s13 = sadd.s32 1, %s9
  $region7: #{tpu_custom_call.1} parent=0 // loop_footer_branch
    %8 = sbr.rel target = $region3
  $region8: #{tpu_custom_call.1} parent=0 // loop_exit
    _

</llo_original>
